<compile_context>
chip_gen: v7x
topology: tpu7x:2x2x1
jax: 0.10.0
libtpu: 0.0.40
codegen_flags: <defaults>
</compile_context>

<pallas_src>
import jax
import jax.numpy as jnp
import numpy as np
from jax import lax
from jax.experimental import pallas as pl
from jax.experimental.pallas import tpu as pltpu


# ---------------------------------------------------------------------------
# Pallas kernels (lane-dense: output last dim is M = B*H*W)
# ---------------------------------------------------------------------------
def _stage1_kernel(p_ref, w_ref, o_ref):
    # p_ref: (K1+1, TM) bf16  im2col(x)^T with trailing ones row (bias)
    # w_ref: (8, K1+1)  bf16  [conv1; conv2_1; conv3_1; conv4_1] weights | bias
    # o_ref: (8, TM)    f32   pre-ReLU outputs, channel-major / pixel-minor
    o_ref[...] = jnp.dot(w_ref[...], p_ref[...],
                         preferred_element_type=jnp.float32)


def _stage2_kernel(o1_ref, p_ref, w_ref, o_ref):
    # o1_ref: (oc, TM)      f32  conv1 output (pre-ReLU) from stage 1
    # p_ref : (K2+1, TM)    bf16 stacked im2col of h2/h3/h4 + ones row
    # w_ref : (3*oc, K2+1)  bf16 block-diagonal [conv2; conv3; conv4] | bias
    # o_ref : (4*oc, TM)    f32  ReLU(concat([conv1, conv2, conv3, conv4]))
    oc = o1_ref.shape[0]
    o234 = jnp.dot(w_ref[...], p_ref[...], preferred_element_type=jnp.float32)
    o_ref[:oc, :] = jnp.maximum(o1_ref[...], 0.0)
    o_ref[oc:, :] = jnp.maximum(o234, 0.0)


def _run_stage1(p_aug, w_aug, tm):
    K1a, M = p_aug.shape
    O1 = w_aug.shape[0]
    return pl.pallas_call(
        _stage1_kernel,
        out_shape=jax.ShapeDtypeStruct((O1, M), jnp.float32),
        grid=(M // tm,),
        in_specs=[
            pl.BlockSpec((K1a, tm), lambda m: (0, m)),
            pl.BlockSpec((O1, K1a), lambda m: (0, 0)),   # weights stay resident
        ],
        out_specs=pl.BlockSpec((O1, tm), lambda m: (0, m)),
        compiler_params=pltpu.CompilerParams(
            dimension_semantics=("parallel",)),
    )(p_aug, w_aug)


def _run_stage2(o1, p_aug, w_aug, tm):
    oc, M = o1.shape
    K2a = p_aug.shape[0]
    O2 = w_aug.shape[0]
    return pl.pallas_call(
        _stage2_kernel,
        out_shape=jax.ShapeDtypeStruct((oc + O2, M), jnp.float32),
        grid=(M // tm,),
        in_specs=[
            pl.BlockSpec((oc, tm), lambda m: (0, m)),
            pl.BlockSpec((K2a, tm), lambda m: (0, m)),
            pl.BlockSpec((O2, K2a), lambda m: (0, 0)),   # weights stay resident
        ],
        out_specs=pl.BlockSpec((oc + O2, tm), lambda m: (0, m)),
        compiler_params=pltpu.CompilerParams(
            dimension_semantics=("parallel",)),
    )(o1, p_aug, w_aug)


# ---------------------------------------------------------------------------
# JAX glue: transposed im2col (built once per stage, already in (K, M) layout)
# ---------------------------------------------------------------------------
def _im2col_T(act, k):
    """'Same' stride-1 im2col, transposed: (C, B, H, W) -> (C*k*k, B*H*W).

    Row order is (c, i, j) c-major, matching w.reshape(O, C*k*k). Padding
    (k-1)//2 matches PyTorch only for odd k (true here: 3, 5, 7).
    """
    C, B, H, W = act.shape
    p = (k - 1) // 2
    ap = jnp.pad(act, ((0, 0), (0, 0), (p, p), (p, p)))
    cols = [ap[:, :, i:i + H, j:j + W] for i in range(k) for j in range(k)]
    pt = jnp.stack(cols, axis=1)                       # (C, k*k, B, H, W)
    return pt.reshape(C * k * k, B * H * W)


# ---------------------------------------------------------------------------
# ConvScale forward (config: input_channels=4, output_channels=8 -> hidden=2,
# per-branch output_channels=2, so the conv_result 1x1 path is never taken).
# ---------------------------------------------------------------------------
def conv_scale_forward(params, x, *, compute_dtype=jnp.bfloat16, tm=128):
    """Forward for input_channels > 1 and per-branch output_channels > 1.

    x: (B, C, H, W) f32 NCHW -> (B, 4*out_c, H, W) f32 NCHW.
    """
    B, C, H, W = x.shape
    M = B * H * W
    if M % tm != 0:
        tm = M                                         # tiny-shape fallback

    w1, b1 = params["conv1"]
    w21, b21 = params["conv2_1"]
    w31, b31 = params["conv3_1"]
    w41, b41 = params["conv4_1"]
    w2, b2 = params["conv2"]
    w3, b3 = params["conv3"]
    w4, b4 = params["conv4"]
    oc = w1.shape[0]
    hid = w21.shape[0]
    k1 = w1.shape[-1]

    # ---- Stage 1: the four k1 x k1 convs on x fused into ONE matmul ---------
    x_cbhw = jnp.transpose(x, (1, 0, 2, 3))            # single NCHW -> CBHW shuffle
    p1 = _im2col_T(x_cbhw, k1)                         # (C*k1*k1, M)
    p1 = jnp.concatenate([p1, jnp.ones((1, M), p1.dtype)], axis=0)
    w_cat = jnp.concatenate(
        [w.reshape(w.shape[0], -1) for w in (w1, w21, w31, w41)], axis=0)
    b_cat = jnp.concatenate([b1, b21, b31, b41])
    w_cat = jnp.concatenate([w_cat, b_cat[:, None]], axis=1)   # bias folded in

    s1 = _run_stage1(p1.astype(compute_dtype),
                     w_cat.astype(compute_dtype), tm)           # (8, M) f32

    o1 = s1[:oc]                                       # conv1 output (pre-ReLU)
    h = s1[oc:].reshape(3, hid, B, H, W)               # conv2_1 / conv3_1 / conv4_1

    # ---- Stage 2: conv2/conv3/conv4 as one block matmul + fused cat + ReLU --
    p2 = jnp.concatenate(
        [_im2col_T(h[0], w2.shape[-1]),
         _im2col_T(h[1], w3.shape[-1]),
         _im2col_T(h[2], w4.shape[-1]),
         jnp.ones((1, M), s1.dtype)], axis=0)                   # (K2+1, M)

    K2 = p2.shape[0] - 1
    w_blk = jnp.zeros((3 * oc, K2 + 1), jnp.float32)
    r, c = 0, 0
    for w, b in ((w2, b2), (w3, b3), (w4, b4)):
        kk = w.shape[1] * w.shape[2] * w.shape[3]
        w_blk = w_blk.at[r:r + oc, c:c + kk].set(w.reshape(oc, kk))
        w_blk = w_blk.at[r:r + oc, K2].set(b)
        r += oc
        c += kk

    out = _run_stage2(o1, p2.astype(compute_dtype),
                      w_blk.astype(compute_dtype), tm)          # (4*oc, M) f32

    return out.reshape(4 * oc, B, H, W).transpose(1, 0, 2, 3)   # back to NCHW


# ---------------------------------------------------------------------------
# Parameter init (PyTorch-style uniform) + pure-JAX reference for checking.
# ---------------------------------------------------------------------------
def init_conv_params(key, out_c, in_c, k):
    kw_key, kb_key = jax.random.split(key)
    bound = 1.0 / np.sqrt(in_c * k * k)
    w = jax.random.uniform(kw_key, (out_c, in_c, k, k), jnp.float32, -bound, bound)
    b = jax.random.uniform(kb_key, (out_c,), jnp.float32, -bound, bound)
    return w, b


def init_conv_scale(key, input_channels, output_channels, kernel_size):
    hidden = max(1, int(input_channels / 2))
    out_c = int(max(1, output_channels / 4))
    keys = jax.random.split(key, 8)
    params = {
        "conv1":   init_conv_params(keys[0], out_c, input_channels, kernel_size[0]),
        "conv2_1": init_conv_params(keys[1], hidden, input_channels, kernel_size[0]),
        "conv3_1": init_conv_params(keys[2], hidden, input_channels, kernel_size[0]),
        "conv4_1": init_conv_params(keys[3], hidden, input_channels, kernel_size[0]),
        "conv2":   init_conv_params(keys[4], out_c, hidden, kernel_size[1]),
        "conv3":   init_conv_params(keys[5], out_c, hidden, kernel_size[2]),
        "conv4":   init_conv_params(keys[6], out_c, hidden, kernel_size[3]),
        # conv_result params exist in the module but are unused when out_c != 1.
        "conv_result": init_conv_params(keys[7], 1, 4, 1),
    }
    return params, hidden, out_c


def _conv_ref(x, w, b):
    kh, kw = w.shape[2], w.shape[3]
    pad = ((kh - 1) // 2, (kh - 1) // 2), ((kw - 1) // 2, (kw - 1) // 2)
    y = lax.conv_general_dilated(x, w, (1, 1), pad,
                                 dimension_numbers=("NCHW", "OIHW", "NCHW"))
    return y + b.reshape(1, -1, 1, 1)


def conv_scale_ref(params, x):
    o1 = _conv_ref(x, *params["conv1"])
    o2 = _conv_ref(_conv_ref(x, *params["conv2_1"]), *params["conv2"])
    o3 = _conv_ref(_conv_ref(x, *params["conv3_1"]), *params["conv3"])
    o4 = _conv_ref(_conv_ref(x, *params["conv4_1"]), *params["conv4"])
    return jnp.maximum(jnp.concatenate([o1, o2, o3, o4], axis=1), 0.0)


if __name__ == "__main__":
    key = jax.random.PRNGKey(0)
    k_x, k_p = jax.random.split(key)

    B, C, H, W = 2, 4, 16, 16
    output_channels = 8
    kernel_size = (3, 3, 5, 7)

    x = jax.random.normal(k_x, (B, C, H, W), jnp.float32)
    params, hidden, out_c = init_conv_scale(k_p, C, output_channels, kernel_size)

    fwd = jax.jit(conv_scale_forward)
    out = jax.block_until_ready(fwd(params, x))
    assert out.shape == (B, 4 * out_c, H, W), out.shape

    ref = jax.block_until_ready(conv_scale_ref(params, x))
    # bf16 MXU operands (f32 accumulation) vs. the f32 reference -> loosened tol.
    np.testing.assert_allclose(np.asarray(out), np.asarray(ref),
                               rtol=5e-2, atol=5e-2)

    print("KERNEL_OK")
</pallas_src>

<mosaic_0001>
module attributes {stable_mosaic.version = 11 : i64} {
  func.func @_stage1_kernel(%arg0: i32, %arg1: memref<37x128xbf16, #tpu.memory_space<vmem>>, %arg2: memref<8x37xbf16, #tpu.memory_space<vmem>>, %arg3: memref<8x128xf32, #tpu.memory_space<vmem>>) attributes {dimension_semantics = [#tpu.dimension_semantics<parallel>], iteration_bounds = array<i64: 4>, scalar_prefetch = 0 : i64, scratch_operands = 0 : i64, tpu.core_type = #tpu.core_type<tc>, window_params = [{transform_indices = @transform_0, window_bounds = array<i64: 37, 128>}, {pipeline_mode = #tpu.pipeline_mode<synchronous>, transform_indices = @transform_1, window_bounds = array<i64: 8, 37>}, {transform_indices = @transform_2, window_bounds = array<i64: 8, 128>}]} {
    %c0 = arith.constant 0 : index
    %c0_0 = arith.constant 0 : index
    %0 = vector.load %arg2[%c0, %c0_0] : memref<8x37xbf16, #tpu.memory_space<vmem>>, vector<8x37xbf16>
    %c0_1 = arith.constant 0 : index
    %c0_2 = arith.constant 0 : index
    %1 = vector.load %arg1[%c0_1, %c0_2] : memref<37x128xbf16, #tpu.memory_space<vmem>>, vector<37x128xbf16>
    %cst = arith.constant dense<0.000000e+00> : vector<8x128xf32>
    %2 = tpu.matmul %0, %1, %cst {dimension_numbers = #tpu.dot_dimension_numbers<[1], [0], [0], [1], [0, 0, 1, 1], [], []>} : vector<8x37xbf16>, vector<37x128xbf16>, vector<8x128xf32> -> vector<8x128xf32>
    %c0_3 = arith.constant 0 : index
    %c0_4 = arith.constant 0 : index
    %3 = vector.load %arg3[%c0_3, %c0_4] : memref<8x128xf32, #tpu.memory_space<vmem>>, vector<8x128xf32>
    tpu.vector_store %arg3[%c0_3, %c0_4], %2 {strides = array<i32>} : memref<8x128xf32, #tpu.memory_space<vmem>>, vector<8x128xf32>,
    return
  }
  func.func @transform_0(%arg0: i32) -> (i32, i32) {
    %c0_i32 = arith.constant 0 : i32
    %c0_i32_0 = arith.constant 0 : i32
    return %c0_i32, %arg0 : i32, i32
  }
  func.func @transform_1(%arg0: i32) -> (i32, i32) {
    %c0_i32 = arith.constant 0 : i32
    %c0_i32_0 = arith.constant 0 : i32
    %c0_i32_1 = arith.constant 0 : i32
    return %c0_i32, %c0_i32_0 : i32, i32
  }
  func.func @transform_2(%arg0: i32) -> (i32, i32) {
    %c0_i32 = arith.constant 0 : i32
    %c0_i32_0 = arith.constant 0 : i32
    return %c0_i32, %arg0 : i32, i32
  }
}

module attributes {stable_mosaic.version = 11 : i64} {
  func.func @_stage2_kernel(%arg0: i32, %arg1: memref<2x128xf32, #tpu.memory_space<vmem>>, %arg2: memref<167x128xbf16, #tpu.memory_space<vmem>>, %arg3: memref<6x167xbf16, #tpu.memory_space<vmem>>, %arg4: memref<8x128xf32, #tpu.memory_space<vmem>>) attributes {dimension_semantics = [#tpu.dimension_semantics<parallel>], iteration_bounds = array<i64: 4>, scalar_prefetch = 0 : i64, scratch_operands = 0 : i64, tpu.core_type = #tpu.core_type<tc>, window_params = [{transform_indices = @transform_0, window_bounds = array<i64: 2, 128>}, {transform_indices = @transform_1, window_bounds = array<i64: 167, 128>}, {pipeline_mode = #tpu.pipeline_mode<synchronous>, transform_indices = @transform_2, window_bounds = array<i64: 6, 167>}, {transform_indices = @transform_3, window_bounds = array<i64: 8, 128>}]} {
    %c0 = arith.constant 0 : index
    %c0_0 = arith.constant 0 : index
    %0 = vector.load %arg3[%c0, %c0_0] : memref<6x167xbf16, #tpu.memory_space<vmem>>, vector<6x167xbf16>
    %c0_1 = arith.constant 0 : index
    %c0_2 = arith.constant 0 : index
    %1 = vector.load %arg2[%c0_1, %c0_2] : memref<167x128xbf16, #tpu.memory_space<vmem>>, vector<167x128xbf16>
    %cst = arith.constant dense<0.000000e+00> : vector<6x128xf32>
    %2 = tpu.matmul %0, %1, %cst {dimension_numbers = #tpu.dot_dimension_numbers<[1], [0], [0], [1], [0, 0, 1, 1], [], []>} : vector<6x167xbf16>, vector<167x128xbf16>, vector<6x128xf32> -> vector<6x128xf32>
    %c0_3 = arith.constant 0 : index
    %c0_4 = arith.constant 0 : index
    %3 = vector.load %arg1[%c0_3, %c0_4] : memref<2x128xf32, #tpu.memory_space<vmem>>, vector<2x128xf32>
    %cst_5 = arith.constant 0.000000e+00 : f32
    %4 = vector.broadcast %cst_5 : f32 to vector<2x128xf32>
    %5 = arith.maximumf %3, %4 : vector<2x128xf32>
    %c0_6 = arith.constant 0 : index
    %c0_7 = arith.constant 0 : index
    %6 = vector.load %arg4[%c0_6, %c0_7] : memref<8x128xf32, #tpu.memory_space<vmem>>, vector<2x128xf32>
    tpu.vector_store %arg4[%c0_6, %c0_7], %5 {strides = array<i32>} : memref<8x128xf32, #tpu.memory_space<vmem>>, vector<2x128xf32>,
    %cst_8 = arith.constant 0.000000e+00 : f32
    %7 = vector.broadcast %cst_8 : f32 to vector<6x128xf32>
    %8 = arith.maximumf %2, %7 : vector<6x128xf32>
    %c2 = arith.constant 2 : index
    %c0_9 = arith.constant 0 : index
    %9 = vector.load %arg4[%c2, %c0_9] : memref<8x128xf32, #tpu.memory_space<vmem>>, vector<6x128xf32>
    tpu.vector_store %arg4[%c2, %c0_9], %8 {strides = array<i32>} : memref<8x128xf32, #tpu.memory_space<vmem>>, vector<6x128xf32>,
    return
  }
  func.func @transform_0(%arg0: i32) -> (i32, i32) {
    %c0_i32 = arith.constant 0 : i32
    %c0_i32_0 = arith.constant 0 : i32
    return %c0_i32, %arg0 : i32, i32
  }
  func.func @transform_1(%arg0: i32) -> (i32, i32) {
    %c0_i32 = arith.constant 0 : i32
    %c0_i32_0 = arith.constant 0 : i32
    return %c0_i32, %arg0 : i32, i32
  }
  func.func @transform_2(%arg0: i32) -> (i32, i32) {
    %c0_i32 = arith.constant 0 : i32
    %c0_i32_0 = arith.constant 0 : i32
    %c0_i32_1 = arith.constant 0 : i32
    return %c0_i32, %c0_i32_0 : i32, i32
  }
  func.func @transform_3(%arg0: i32) -> (i32, i32) {
    %c0_i32 = arith.constant 0 : i32
    %c0_i32_0 = arith.constant 0 : i32
    return %c0_i32, %arg0 : i32, i32
  }
}

</mosaic_0001>

<llo_original>
// kernel: conv_scale_forward.2
$region0: #{conv_scale_forward.2}
  #allocation0 [shape = 'u32[]', space=smem, size = 0x4, offset = 0x4, fixed_abs, tag = 'smem constant byte address 0x4 - core index']
  #allocation1 [shape = 'u32[144,128]{1,0:T(1,128)}', space=vmem, size = 0x12000, scoped, tag = 'internal scratch']
  %s0 = inlined_call_operand.vmem [shape: bf16[37,512], index: 0, kind: input, shape index: {}]
  %s1 = inlined_call_operand.vmem [shape: bf16[8,37], index: 1, kind: input, shape index: {}]
  %s2 = inlined_call_operand.vmem [shape: f32[8,512], index: 2, kind: output, shape index: {}]
  %s3 = sld [smem:[#allocation0]]
  $region82: #{conv_scale_forward.2} parent=0
    _
  %s5 = ssub.s32 1, %s3
  %s6 = scalar_select 0, %s5, %s3
  $region1: #{conv_scale_forward.2} parent=0
    #allocation2 [shape = 'u8[20480]{0}', space=vmem, size = 0x5000, scoped, tag = 'input window, operand 0']
    loop: start=0, step=1, limit=6
    $region2: #{conv_scale_forward.2} parent=1 // loop_pre_header
      _
    $region3: #{conv_scale_forward.2} parent=1 // loop_header
      %s8 = sphi 0, %s12
      %p9 = scmp.ge.s32.totalorder %s8, 6
      %s18 = sphi 0, %s20
      %s21 = sphi 0, %s18
      %s22 = sphi 0, %s21
      %s38 = sphi 0, %s22
      %s42 = sphi 0, %s42
      %s44 = sphi 0, %s42
      %s45 = sphi 0, %s44
      %s59 = sphi 0, %s45
      %s65 = sphi 0, %s67
      %s68 = sphi 0, %s65
      %s69 = sphi 0, %s68
      %s85 = sphi 0, %s69
    $region4: #{conv_scale_forward.2} parent=1 // loop_header_branch
      %11 = sbr.rel (%p9) target = $region8
    $region5: #{conv_scale_forward.2} parent=1 // loop_body
      %s13 = ssub.s32 %s8, 1
      %s14 = ssub.s32 %s8, 2
      %s15 = sadd.s32 %s8, 1
      %s16 = ssub.s32 %s8, %s15
      %p17 = scmp.eq.s32.totalorder %s16, 0
      %s19 = sadd.s32 %s18, 1
      %s20 = scalar_select %p17, %s18, %s19
      %p23 = pneg %p17
      %p24 = scmp.eq.s32.totalorder %s8, 3
      %p25 = por %p23, %p24
      %p26 = scmp.ne.s32.totalorder %s18, %s21
      %p27 = scmp.eq.s32.totalorder %s8, 0
      %p28 = por %p26, %p27
      %p29 = scmp.ne.s32.totalorder %s18, %s21
      %p30 = scmp.eq.s32.totalorder %s13, 3
      %p31 = por %p29, %p30
      %p32 = scmp.ne.s32.totalorder %s21, %s22
      %p33 = scmp.eq.s32.totalorder %s13, 0
      %p34 = por %p32, %p33
      %p35 = scmp.ne.s32.totalorder %s21, %s22
      %p36 = scmp.eq.s32.totalorder %s14, 3
      %p37 = por %p35, %p36
      %p39 = scmp.ne.s32.totalorder %s22, %s38
      %p40 = scmp.eq.s32.totalorder %s14, 0
      %p41 = por %p39, %p40
      %s43 = sadd.s32 %s42, 1
      %p46 = scmp.eq.s32.totalorder %s8, 3
      %p47 = scmp.ne.s32.totalorder %s42, %s44
      %p48 = scmp.eq.s32.totalorder %s8, 0
      %p49 = por %p47, %p48
      %p50 = scmp.ne.s32.totalorder %s42, %s44
      %p51 = scmp.eq.s32.totalorder %s13, 3
      %p52 = por %p50, %p51
      %p53 = scmp.ne.s32.totalorder %s44, %s45
      %p54 = scmp.eq.s32.totalorder %s13, 0
      %p55 = por %p53, %p54
      %p56 = scmp.ne.s32.totalorder %s44, %s45
      %p57 = scmp.eq.s32.totalorder %s14, 3
      %p58 = por %p56, %p57
      %p60 = scmp.ne.s32.totalorder %s45, %s59
      %p61 = scmp.eq.s32.totalorder %s14, 0
      %p62 = por %p60, %p61
      %s63 = ssub.s32 %s8, %s15
      %p64 = scmp.eq.s32.totalorder %s63, 0
      %s66 = sadd.s32 %s65, 1
      %s67 = scalar_select %p64, %s65, %s66
      %p70 = pneg %p64
      %p71 = scmp.eq.s32.totalorder %s8, 3
      %p72 = por %p70, %p71
      %p73 = scmp.ne.s32.totalorder %s65, %s68
      %p74 = scmp.eq.s32.totalorder %s8, 0
      %p75 = por %p73, %p74
      %p76 = scmp.ne.s32.totalorder %s65, %s68
      %p77 = scmp.eq.s32.totalorder %s13, 3
      %p78 = por %p76, %p77
      %p79 = scmp.ne.s32.totalorder %s68, %s69
      %p80 = scmp.eq.s32.totalorder %s13, 0
      %p81 = por %p79, %p80
      %p82 = scmp.ne.s32.totalorder %s68, %s69
      %p83 = scmp.eq.s32.totalorder %s14, 3
      %p84 = por %p82, %p83
      %p86 = scmp.ne.s32.totalorder %s69, %s85
      %p87 = scmp.eq.s32.totalorder %s14, 0
      %p88 = por %p86, %p87
      %p89 = scmp.le.s32.totalorder 1, %s8
      %p90 = scmp.lt.s32.totalorder %s8, 5
      %p91 = pnand %p89, %p90
      %p92 = pneg %p91
      // Predicated region
      $region9: #{conv_scale_forward.2} parent=5 // pred_check
        _
      $region10: #{conv_scale_forward.2} parent=5 // pred_check_branch
        %94 = sbr.rel (%p91) target = $region12
      $region11: #{conv_scale_forward.2} parent=5 // pred_region
        %s95 = ssub.s32 %s8, 1
        // Predicated region
        $region13: #{conv_scale_forward.2} parent=11 // pred_check
          %p96 = pneg %p55
        $region14: #{conv_scale_forward.2} parent=11 // pred_check_branch
          %98 = sbr.rel (%p96) target = $region16
        $region15: #{conv_scale_forward.2} parent=11 // pred_region
          _
        $region16: #{conv_scale_forward.2} parent=11 // pred_fallthru
          _
      $region12: #{conv_scale_forward.2} parent=5 // pred_fallthru
        _
      %p99 = scmp.lt.s32.totalorder %s8, 4
      // Predicated region
      $region17: #{conv_scale_forward.2} parent=5 // pred_check
        %p100 = pneg %p99
      $region18: #{conv_scale_forward.2} parent=5 // pred_check_branch
        %102 = sbr.rel (%p100) target = $region20
      $region19: #{conv_scale_forward.2} parent=5 // pred_region
        // Predicated region
        $region21: #{conv_scale_forward.2} parent=19 // pred_check
          %p103 = pneg %p28
        $region22: #{conv_scale_forward.2} parent=19 // pred_check_branch
          %105 = sbr.rel (%p103) target = $region24
        $region23: #{conv_scale_forward.2} parent=19 // pred_region
          %s106 = sand.u32 %s18, 1
          %s107 = sand.u32 %s18, 1
          %s108 = smul.addr %s107, 20
          %s109 = scalar_lea.vmem [#allocation2], %s108
          %s110 = smul.addr %s8, 4
          %s111 = scalar_lea.vmem %s0, %s110
          // Predicated region
          $region25: #{conv_scale_forward.2} parent=23 // pred_check
            _
          $region26: #{conv_scale_forward.2} parent=23 // pred_check_branch
            %113 = sbr.rel (0) target = $region28
          $region27: #{conv_scale_forward.2} parent=23 // pred_region
            // Predicated region
            $region29: #{conv_scale_forward.2} parent=27 // pred_check
              _
            $region30: #{conv_scale_forward.2} parent=27 // pred_check_branch
              %115 = sbr.rel target = $region32
            $region31: #{conv_scale_forward.2} parent=27 // pred_region
              // Predicated region
              $region44: #{conv_scale_forward.2} parent=31 // pred_check
                _
              $region45: #{conv_scale_forward.2} parent=31 // pred_check_branch
                %138 = sbr.rel (0) target = $region47
              $region46: #{conv_scale_forward.2} parent=31 // pred_region
                loop: start=0, step=1, limit=1
                $region48: #{conv_scale_forward.2} parent=46 // loop_pre_header
                  _
                $region49: #{conv_scale_forward.2} parent=46 // loop_header
                  %s140 = sphi 0, %s144
                  %p141 = scmp.ge.s32.totalorder %s140, 1
                  %s145 = sphi %s111, %s111
                  %s146 = sphi %s109, %s109
                $region50: #{conv_scale_forward.2} parent=46 // loop_header_branch
                  %143 = sbr.rel (%p141) target = $region54
                $region51: #{conv_scale_forward.2} parent=46 // loop_body
                  _
                $region52: #{conv_scale_forward.2} parent=46 // loop_footer
                  %s144 = sadd.s32 1, %s140
                $region53: #{conv_scale_forward.2} parent=46 // loop_footer_branch
                  %139 = sbr.rel target = $region49
                $region54: #{conv_scale_forward.2} parent=46 // loop_exit
                  _
                loop: start=0, step=1, limit=1
                $region55: #{conv_scale_forward.2} parent=46 // loop_pre_header
                  _
                $region56: #{conv_scale_forward.2} parent=46 // loop_header
                  %s149 = sphi 0, %s153
                  %p150 = scmp.ge.s32.totalorder %s149, 1
                  %s154 = sphi %s111, %s111
                  %s155 = sphi %s109, %s109
                $region57: #{conv_scale_forward.2} parent=46 // loop_header_branch
                  %152 = sbr.rel (%p150) target = $region61
                $region58: #{conv_scale_forward.2} parent=46 // loop_body
                  %v156 = vld [vmem:[%s154] sm:$0xf]
                  %157 = vst [vmem:[%s155] sm:$0xf] %v156
                  %v158 = vld [vmem:[%s154 + $0x10] sm:$0xf]
                  %159 = vst [vmem:[%s155 + $0x4] sm:$0xf] %v158
                  %v160 = vld [vmem:[%s154 + $0x20] sm:$0xf]
                  %161 = vst [vmem:[%s155 + $0x8] sm:$0xf] %v160
                  %v162 = vld [vmem:[%s154 + $0x30] sm:$0xf]
                  %163 = vst [vmem:[%s155 + $0xc] sm:$0xf] %v162
                  %v164 = vld [vmem:[%s154 + $0x40] sm:$0xf]
                  %165 = vst [vmem:[%s155 + $0x10] sm:$0xf] %v164
                $region59: #{conv_scale_forward.2} parent=46 // loop_footer
                  %s153 = sadd.s32 1, %s149
                $region60: #{conv_scale_forward.2} parent=46 // loop_footer_branch
                  %148 = sbr.rel target = $region56
                $region61: #{conv_scale_forward.2} parent=46 // loop_exit
                  _
              $region47: #{conv_scale_forward.2} parent=31 // pred_fallthru
                _
            $region32: #{conv_scale_forward.2} parent=27 // pred_fallthru
              _
            // Predicated region
            $region33: #{conv_scale_forward.2} parent=27 // pred_check
              _
            $region34: #{conv_scale_forward.2} parent=27 // pred_check_branch
              %117 = sbr.rel (0) target = $region36
            $region35: #{conv_scale_forward.2} parent=27 // pred_region
              loop: start=0, step=1, limit=1
              $region37: #{conv_scale_forward.2} parent=35 // loop_pre_header
                _
              $region38: #{conv_scale_forward.2} parent=35 // loop_header
                %s120 = sphi 0, %s124
                %p121 = scmp.ge.s32.totalorder %s120, 1
                %s125 = sphi %s111, %s111
                %s126 = sphi %s109, %s109
              $region39: #{conv_scale_forward.2} parent=35 // loop_header_branch
                %123 = sbr.rel (%p121) target = $region43
              $region40: #{conv_scale_forward.2} parent=35 // loop_body
                %v127 = vld [vmem:[%s125] sm:$0xf]
                %128 = vst [vmem:[%s126] sm:$0xf] %v127
                %v129 = vld [vmem:[%s125 + $0x10] sm:$0xf]
                %130 = vst [vmem:[%s126 + $0x4] sm:$0xf] %v129
                %v131 = vld [vmem:[%s125 + $0x20] sm:$0xf]
                %132 = vst [vmem:[%s126 + $0x8] sm:$0xf] %v131
                %v133 = vld [vmem:[%s125 + $0x30] sm:$0xf]
                %134 = vst [vmem:[%s126 + $0xc] sm:$0xf] %v133
                %v135 = vld [vmem:[%s125 + $0x40] sm:$0xf]
                %136 = vst [vmem:[%s126 + $0x10] sm:$0xf] %v135
              $region41: #{conv_scale_forward.2} parent=35 // loop_footer
                %s124 = sadd.s32 1, %s120
              $region42: #{conv_scale_forward.2} parent=35 // loop_footer_branch
                %119 = sbr.rel target = $region38
              $region43: #{conv_scale_forward.2} parent=35 // loop_exit
                _
            $region36: #{conv_scale_forward.2} parent=27 // pred_fallthru
              _
          $region28: #{conv_scale_forward.2} parent=23 // pred_fallthru
            _
          %166 = vnop
        $region24: #{conv_scale_forward.2} parent=19 // pred_fallthru
          _
      $region20: #{conv_scale_forward.2} parent=5 // pred_fallthru
        _
      %p167 = scmp.le.s32.totalorder 1, %s8
      %p168 = scmp.lt.s32.totalorder %s8, 5
      %p169 = pnand %p167, %p168
      %p170 = pneg %p169
      // Predicated region
      $region62: #{conv_scale_forward.2} parent=5 // pred_check
        _
      $region63: #{conv_scale_forward.2} parent=5 // pred_check_branch
        %172 = sbr.rel (%p169) target = $region65
      $region64: #{conv_scale_forward.2} parent=5 // pred_region
        %s173 = ssub.s32 %s8, 1
        %s174 = sand.u32 %s21, 1
        %s175 = sand.u32 %s21, 1
        %s176 = smul.addr %s175, 20
        %s177 = scalar_lea.vmem [#allocation2], %s176
        // Predicated region
        $region66: #{conv_scale_forward.2} parent=64 // pred_check
          %p178 = pneg %p34
        $region67: #{conv_scale_forward.2} parent=64 // pred_check_branch
          %180 = sbr.rel (%p178) target = $region69
        $region68: #{conv_scale_forward.2} parent=64 // pred_region
          _
        $region69: #{conv_scale_forward.2} parent=64 // pred_fallthru
          _
        %s181 = sand.u32 %s21, 1
        %s182 = sand.u32 %s21, 1
        %s183 = smul.addr %s182, 20
        %s184 = scalar_lea.vmem [#allocation2], %s183
        %p185 = pneg %p34
        %p186 = pneg %p31
        %p187 = pneg %p55
        %p188 = pneg %p52
        %p189 = pneg %p81
        %p190 = pneg %p78
        %p191 = scmp.lt.s32.totalorder %s13, 3
        %s192 = scalar_select %p191, %s13, 3
        %s193 = smul.addr %s192, 8
        %s194 = scalar_lea.vmem %s2, %s193
        %p195 = scmp.lt.s32.totalorder %s13, 3
        %s196 = scalar_select %p195, %s13, 3
        %s197 = smul.addr %s196, 8
        %s198 = scalar_lea.vmem %s2, %s197
        %v200 = vld [vmem:[%s1] sm:$0xf]
        %v201 = vld [vmem:[%s177] sm:$0xf]
        %v202 = vld [vmem:[%s177 + $0x4] sm:$0xf]
        %v203 = vld [vmem:[%s177 + $0x8] sm:$0xf]
        %v204 = vld [vmem:[%s177 + $0xc] sm:$0xf]
        %v205 = vld [vmem:[%s177 + $0x10] sm:$0x7]
        %v211 = vunpack.c.l.b16 %v201
        %v212 = vunpack.c.l.b16 %v202
        %v213 = vunpack.c.l.b16 %v203
        %v214 = vunpack.c.l.b16 %v204
        %v215 = vunpack.c.l.b16 %v205
        %v216 = vpack.c.b16 %v212, %v211
        %v217 = vpack.c.b16 %v214, %v213
        %v218 = vpack.c.b16 %v215, %v215
        %vm221 = vcmask 302080
        %v223 = vsel %vm221, %v200, 0
        %vm225 = vcmask 1041408
        %vm226 = vcmask 1042432
        %v227 = vsel %vm225, 4294967295, 65535
        %v228 = vsel %vm226, %v227, 0
        %v230 = vand.u32 %v218, %v228
        %232 = vmatprep.subr.bf16.mxu0 0
        %233 = vmatpush1.bf16.msra.mxu0 %v216
        %234 = vmatprep.subr.bf16.mxu0 0
        %235 = vmatpush1.bf16.msra.mxu0 %v217
        %236 = vmatprep.subr.bf16.mxu0 0
        %237 = vmatpush1.bf16.msra.mxu0 %v230
        %238 = vmatprep.subr.bf16.mxu0 0
        %239 = vmatpush1.bf16.msra.mxu0 0
        %240 = vmatprep.subr.bf16.mxu0 0
        %241 = vmatpush1.bf16.msra.mxu0 0
        %242 = vmatprep.subr.bf16.mxu0 0
        %243 = vmatpush1.bf16.msra.mxu0 0
        %244 = vmatprep.subr.bf16.mxu0 0
        %245 = vmatpush1.bf16.msra.mxu0 0
        %246 = vmatprep.subr.bf16.mxu0 0
        %247 = vmatpush1.bf16.msra.mxu0 0
        %248 = vmatprep.subr.bf16.mxu0 0
        %249 = vmatpush1.bf16.msra.mxu0 0
        %250 = vmatprep.subr.bf16.mxu0 0
        %251 = vmatpush1.bf16.msra.mxu0 0
        %252 = vmatprep.subr.bf16.mxu0 0
        %253 = vmatpush1.bf16.msra.mxu0 0
        %254 = vmatprep.subr.bf16.mxu0 0
        %255 = vmatpush1.bf16.msra.mxu0 0
        %256 = vmatprep.subr.bf16.mxu0 0
        %257 = vmatpush1.bf16.msra.mxu0 0
        %258 = vmatprep.subr.bf16.mxu0 0
        %259 = vmatpush1.bf16.msra.mxu0 0
        %260 = vmatprep.subr.bf16.mxu0 0
        %261 = vmatpush1.bf16.msra.mxu0 0
        %262 = vmatprep.subr.bf16.mxu0 0
        %263 = vmatpush1.bf16.msra.mxu0 0
        %264 = vmatprep.mubr.bf16.mxu0 0
        %265 = vmatmul.mubr.bf16.gmra.mrb[0].mxu0 %v223
        %v266 = vpop.f32.mrb[0].mxu0
        %v267 = vadd.f32 0.0, %v266
        %v268 = vpop.f32.mrb[0].mxu0
        %v269 = vpop.f32.mrb[0].mxu0
        %v270 = vpop.f32.mrb[0].mxu0
        %271 = vdwg.mxu0
        %272 = vst [vmem:[%s198] sm:$0xff] %v267
        %p273 = scmp.lt.s32.totalorder %s13, 3
        %s274 = scalar_select %p273, %s13, 3
        %s275 = smul.addr %s274, 8
        %s276 = scalar_lea.vmem %s2, %s275
        // Predicated region
        $region70: #{conv_scale_forward.2} parent=64 // pred_check
          %p277 = pneg %p78
        $region71: #{conv_scale_forward.2} parent=64 // pred_check_branch
          %279 = sbr.rel (%p277) target = $region73
        $region72: #{conv_scale_forward.2} parent=64 // pred_region
          _
        $region73: #{conv_scale_forward.2} parent=64 // pred_fallthru
          _
      $region65: #{conv_scale_forward.2} parent=5 // pred_fallthru
        _
      %p280 = scmp.le.s32.totalorder 2, %s8
      // Predicated region
      $region74: #{conv_scale_forward.2} parent=5 // pred_check
        %p281 = pneg %p280
      $region75: #{conv_scale_forward.2} parent=5 // pred_check_branch
        %283 = sbr.rel (%p281) target = $region77
      $region76: #{conv_scale_forward.2} parent=5 // pred_region
        %s284 = ssub.s32 %s8, 2
        // Predicated region
        $region78: #{conv_scale_forward.2} parent=76 // pred_check
          %p285 = pneg %p84
        $region79: #{conv_scale_forward.2} parent=76 // pred_check_branch
          %287 = sbr.rel (%p285) target = $region81
        $region80: #{conv_scale_forward.2} parent=76 // pred_region
          %p288 = scmp.lt.s32.totalorder %s14, 3
          %s289 = scalar_select %p288, %s14, 3
          %s290 = smul.addr %s289, 8
          %s291 = scalar_lea.vmem %s2, %s290
        $region81: #{conv_scale_forward.2} parent=76 // pred_fallthru
          _
      $region77: #{conv_scale_forward.2} parent=5 // pred_fallthru
        _
    $region6: #{conv_scale_forward.2} parent=1 // loop_footer
      %s12 = sadd.s32 1, %s8
    $region7: #{conv_scale_forward.2} parent=1 // loop_footer_branch
      %7 = sbr.rel target = $region3
    $region8: #{conv_scale_forward.2} parent=1 // loop_exit
      _

// kernel: squeeze.3
$region0: #{squeeze.3}
  %s0 = inlined_call_operand.vmem [shape: bf16[2,512], index: 0, kind: input, shape index: {}]
  %s1 = inlined_call_operand.vmem [shape: bf16[2,2,16,16], index: 1, kind: output, shape index: {}]
  $region1: #{squeeze.3} parent=0
    #allocation0 [shape = 'u8[32768]{0}', space=vmem, size = 0x8000, scoped, tag = 'scoped mem for output reshape']
    #allocation1 [shape = 'u8[16384]{0}', space=vmem, size = 0x4000, scoped, tag = 'scoped mem for input reshape']
    %s3 = smul.u32 1, 2
    %s4 = sshllo.u32 0, %s3
    %s5 = smul.addr 1, 3
    %s6 = scalar_lea.vmem %s0, %s5
    %s7 = sshrl.u32 %s4, 1
    %s8 = sor.u32 %s4, %s7
    %s9 = sand.u32 %s8, 85
    %s10 = sshrl.u32 %s9, 1
    %s11 = sor.u32 %s9, %s10
    %s12 = sand.u32 51, %s11
    %s13 = sshrl.u32 %s12, 2
    %s14 = sor.u32 %s12, %s13
    %s15 = sand.u32 15, %s14
    %v16 = vld [vmem:[%s6] sm:%s15]
    %v17 = vunpack.c.l.bf16 %v16
    %v18 = vunpack.c.h.bf16 %v16
    %s19 = scalar_lea.vmem [#allocation1], 24
    %20 = vst [vmem:[%s19] sm:%s4] %v17
    %s21 = smul.addr 1, 2
    %s22 = scalar_lea.vmem %s0, %s21
    %s23 = sshrl.u32 %s4, 1
    %s24 = sor.u32 %s4, %s23
    %s25 = sand.u32 %s24, 85
    %s26 = sshrl.u32 %s25, 1
    %s27 = sor.u32 %s25, %s26
    %s28 = sand.u32 51, %s27
    %s29 = sshrl.u32 %s28, 2
    %s30 = sor.u32 %s28, %s29
    %s31 = sand.u32 15, %s30
    %v32 = vld [vmem:[%s22] sm:%s31]
    %v33 = vunpack.c.l.bf16 %v32
    %v34 = vunpack.c.h.bf16 %v32
    %s35 = scalar_lea.vmem [#allocation1], 16
    %36 = vst [vmem:[%s35] sm:%s4] %v33
    %s37 = scalar_lea.vmem %s0, 1
    %s38 = sshrl.u32 %s4, 1
    %s39 = sor.u32 %s4, %s38
    %s40 = sand.u32 %s39, 85
    %s41 = sshrl.u32 %s40, 1
    %s42 = sor.u32 %s40, %s41
    %s43 = sand.u32 51, %s42
    %s44 = sshrl.u32 %s43, 2
    %s45 = sor.u32 %s43, %s44
    %s46 = sand.u32 15, %s45
    %v47 = vld [vmem:[%s37] sm:%s46]
    %v48 = vunpack.c.l.bf16 %v47
    %v49 = vunpack.c.h.bf16 %v47
    %s50 = scalar_lea.vmem [#allocation1], 8
    %51 = vst [vmem:[%s50] sm:%s4] %v48
    %s52 = sshrl.u32 %s4, 1
    %s53 = sor.u32 %s4, %s52
    %s54 = sand.u32 %s53, 85
    %s55 = sshrl.u32 %s54, 1
    %s56 = sor.u32 %s54, %s55
    %s57 = sand.u32 51, %s56
    %s58 = sshrl.u32 %s57, 2
    %s59 = sor.u32 %s57, %s58
    %s60 = sand.u32 15, %s59
    %v61 = vld [vmem:[%s0] sm:%s60]
    %v62 = vunpack.c.l.bf16 %v61
    %v63 = vunpack.c.h.bf16 %v61
    %64 = vst [vmem:[#allocation1] sm:%s4] %v62
    %v65 = vld [vmem:[#allocation1] sm:$0x3]
    %vm66 = vcmask 130048
    %67 = vst.msk [vmem:[#allocation0] sm:$0x1] %vm66, %v65
    %s68 = scalar_lea.vmem [#allocation0], 31
    %69 = vst.msk [vmem:[%s68] sm:$0x2] %vm66, %v65
    %s70 = scalar_lea.vmem [#allocation1], 8
    %v71 = vld [vmem:[%s70] sm:$0x3]
    %vm72 = vcmask 130048
    %s73 = scalar_lea.vmem [#allocation0], 8
    %74 = vst.msk [vmem:[%s73] sm:$0x1] %vm72, %v71
    %s75 = scalar_lea.vmem [#allocation0], 39
    %76 = vst.msk [vmem:[%s75] sm:$0x2] %vm72, %v71
    %s77 = scalar_lea.vmem [#allocation1], 16
    %v78 = vld [vmem:[%s77] sm:$0x3]
    %vm79 = vcmask 130048
    %s80 = scalar_lea.vmem [#allocation0], 16
    %81 = vst.msk [vmem:[%s80] sm:$0x1] %vm79, %v78
    %s82 = scalar_lea.vmem [#allocation0], 47
    %83 = vst.msk [vmem:[%s82] sm:$0x2] %vm79, %v78
    %s84 = scalar_lea.vmem [#allocation1], 24
    %v85 = vld [vmem:[%s84] sm:$0x3]
    %vm86 = vcmask 130048
    %s87 = scalar_lea.vmem [#allocation0], 24
    %88 = vst.msk [vmem:[%s87] sm:$0x1] %vm86, %v85
    %s89 = scalar_lea.vmem [#allocation0], 55
    %90 = vst.msk [vmem:[%s89] sm:$0x2] %vm86, %v85
    %v91 = vld [vmem:[#allocation1] ss:$8 sm:$0xf]
    %s92 = scalar_lea.vmem [#allocation1], 4294967265
    %v93 = vld [vmem:[%s92] ss:$8 sm:$0xf0]
    %vm94 = vcmask 1047556
    %v95 = vsel %vm94, %v93, %v91
    %96 = vrot.lane.b32.xlu0 %v95, 112
    %v97 = vpop.permute.xlu0 %96
    %vm98 = vcmask 130048
    %s99 = scalar_lea.vmem [#allocation0], 1
    %100 = vst.msk [vmem:[%s99] ss:$8 sm:$0xf] %vm98, %v97
    %s101 = scalar_lea.vmem [#allocation0], 1
    %102 = vst.msk [vmem:[%s101] ss:$8 sm:$0xf0] %vm98, %v97
    %v103 = vld [vmem:[#allocation1] ss:$8 sm:$0xf]
    %s104 = scalar_lea.vmem [#allocation1], 4294967265
    %v105 = vld [vmem:[%s104] ss:$8 sm:$0xf0]
    %vm106 = vcmask 1047556
    %v107 = vsel %vm106, %v105, %v103
    %108 = vrot.lane.b32.xlu0 %v107, 96
    %v109 = vpop.permute.xlu0 %108
    %vm110 = vcmask 130048
    %s111 = scalar_lea.vmem [#allocation0], 2
    %112 = vst.msk [vmem:[%s111] ss:$8 sm:$0xf] %vm110, %v109
    %s113 = scalar_lea.vmem [#allocation0], 2
    %114 = vst.msk [vmem:[%s113] ss:$8 sm:$0xf0] %vm110, %v109
    %v115 = vld [vmem:[#allocation1] ss:$8 sm:$0xf]
    %s116 = scalar_lea.vmem [#allocation1], 4294967265
    %v117 = vld [vmem:[%s116] ss:$8 sm:$0xf0]
    %vm118 = vcmask 1047556
    %v119 = vsel %vm118, %v117, %v115
    %120 = vrot.lane.b32.xlu0 %v119, 80
    %v121 = vpop.permute.xlu0 %120
    %vm122 = vcmask 130048
    %s123 = scalar_lea.vmem [#allocation0], 3
    %124 = vst.msk [vmem:[%s123] ss:$8 sm:$0xf] %vm122, %v121
    %s125 = scalar_lea.vmem [#allocation0], 3
    %126 = vst.msk [vmem:[%s125] ss:$8 sm:$0xf0] %vm122, %v121
    %v127 = vld [vmem:[#allocation1] ss:$8 sm:$0xf]
    %s128 = scalar_lea.vmem [#allocation1], 4294967265
    %v129 = vld [vmem:[%s128] ss:$8 sm:$0xf0]
    %vm130 = vcmask 1047556
    %v131 = vsel %vm130, %v129, %v127
    %132 = vrot.lane.b32.xlu0 %v131, 64
    %v133 = vpop.permute.xlu0 %132
    %vm134 = vcmask 130048
    %s135 = scalar_lea.vmem [#allocation0], 4
    %136 = vst.msk [vmem:[%s135] ss:$8 sm:$0xf] %vm134, %v133
    %s137 = scalar_lea.vmem [#allocation0], 4
    %138 = vst.msk [vmem:[%s137] ss:$8 sm:$0xf0] %vm134, %v133
    %v139 = vld [vmem:[#allocation1] ss:$8 sm:$0xf]
    %s140 = scalar_lea.vmem [#allocation1], 4294967265
    %v141 = vld [vmem:[%s140] ss:$8 sm:$0xf0]
    %vm142 = vcmask 1047556
    %v143 = vsel %vm142, %v141, %v139
    %144 = vrot.lane.b32.xlu0 %v143, 48
    %v145 = vpop.permute.xlu0 %144
    %vm146 = vcmask 130048
    %s147 = scalar_lea.vmem [#allocation0], 5
    %148 = vst.msk [vmem:[%s147] ss:$8 sm:$0xf] %vm146, %v145
    %s149 = scalar_lea.vmem [#allocation0], 5
    %150 = vst.msk [vmem:[%s149] ss:$8 sm:$0xf0] %vm146, %v145
    %v151 = vld [vmem:[#allocation1] ss:$8 sm:$0xf]
    %s152 = scalar_lea.vmem [#allocation1], 4294967265
    %v153 = vld [vmem:[%s152] ss:$8 sm:$0xf0]
    %vm154 = vcmask 1047556
    %v155 = vsel %vm154, %v153, %v151
    %156 = vrot.lane.b32.xlu0 %v155, 32
    %v157 = vpop.permute.xlu0 %156
    %vm158 = vcmask 130048
    %s159 = scalar_lea.vmem [#allocation0], 6
    %160 = vst.msk [vmem:[%s159] ss:$8 sm:$0xf] %vm158, %v157
    %s161 = scalar_lea.vmem [#allocation0], 6
    %162 = vst.msk [vmem:[%s161] ss:$8 sm:$0xf0] %vm158, %v157
    %v163 = vld [vmem:[#allocation1] ss:$8 sm:$0xf]
    %s164 = scalar_lea.vmem [#allocation1], 4294967265
    %v165 = vld [vmem:[%s164] ss:$8 sm:$0xf0]
    %vm166 = vcmask 1047556
    %v167 = vsel %vm166, %v165, %v163
    %168 = vrot.lane.b32.xlu0 %v167, 16
    %v169 = vpop.permute.xlu0 %168
    %vm170 = vcmask 130048
    %s171 = scalar_lea.vmem [#allocation0], 7
    %172 = vst.msk [vmem:[%s171] ss:$8 sm:$0xf] %vm170, %v169
    %s173 = scalar_lea.vmem [#allocation0], 7
    %174 = vst.msk [vmem:[%s173] ss:$8 sm:$0xf0] %vm170, %v169
    %s176 = smul.u32 4, 2
    %s177 = sshllo.u32 0, %s176
    %s178 = sshrl.u32 %s176, 1
    %v179 = vld [vmem:[#allocation0] sm:%s177]
    %v180 = vpack.c.bf16 0.0, %v179
    %s181 = sshllo.u32 0, %s178
    %182 = vst [vmem:[%s1] sm:%s181] %v180
    %s183 = scalar_lea.vmem [#allocation0], 8
    %v184 = vld [vmem:[%s183] sm:%s177]
    %v185 = vpack.c.bf16 0.0, %v184
    %s186 = sshllo.u32 0, %s178
    %s187 = scalar_lea.vmem %s1, 4
    %188 = vst [vmem:[%s187] sm:%s186] %v185
    %s189 = scalar_lea.vmem [#allocation0], 16
    %v190 = vld [vmem:[%s189] sm:%s177]
    %v191 = vpack.c.bf16 0.0, %v190
    %s192 = sshllo.u32 0, %s178
    %s193 = smul.addr 4, 2
    %s194 = scalar_lea.vmem %s1, %s193
    %195 = vst [vmem:[%s194] sm:%s192] %v191
    %s196 = scalar_lea.vmem [#allocation0], 24
    %v197 = vld [vmem:[%s196] sm:%s177]
    %v198 = vpack.c.bf16 0.0, %v197
    %s199 = sshllo.u32 0, %s178
    %s200 = smul.addr 4, 3
    %s201 = scalar_lea.vmem %s1, %s200
    %202 = vst [vmem:[%s201] sm:%s199] %v198
    %s203 = scalar_lea.vmem [#allocation0], 32
    %v204 = vld [vmem:[%s203] sm:%s177]
    %v205 = vpack.c.bf16 0.0, %v204
    %s206 = sshllo.u32 0, %s178
    %s207 = smul.addr 4, 4
    %s208 = scalar_lea.vmem %s1, %s207
    %209 = vst [vmem:[%s208] sm:%s206] %v205
    %s210 = scalar_lea.vmem [#allocation0], 40
    %v211 = vld [vmem:[%s210] sm:%s177]
    %v212 = vpack.c.bf16 0.0, %v211
    %s213 = sshllo.u32 0, %s178
    %s214 = smul.addr 4, 5
    %s215 = scalar_lea.vmem %s1, %s214
    %216 = vst [vmem:[%s215] sm:%s213] %v212
    %s217 = scalar_lea.vmem [#allocation0], 48
    %v218 = vld [vmem:[%s217] sm:%s177]
    %v219 = vpack.c.bf16 0.0, %v218
    %s220 = sshllo.u32 0, %s178
    %s221 = smul.addr 4, 6
    %s222 = scalar_lea.vmem %s1, %s221
    %223 = vst [vmem:[%s222] sm:%s220] %v219
    %s224 = scalar_lea.vmem [#allocation0], 56
    %v225 = vld [vmem:[%s224] sm:%s177]
    %v226 = vpack.c.bf16 0.0, %v225
    %s227 = sshllo.u32 0, %s178
    %s228 = smul.addr 4, 7
    %s229 = scalar_lea.vmem %s1, %s228
    %230 = vst [vmem:[%s229] sm:%s227] %v226

// kernel: conv_scale_forward.3
$region0: #{conv_scale_forward.3}
  #allocation0 [shape = 'u32[]', space=smem, size = 0x4, offset = 0x4, fixed_abs, tag = 'smem constant byte address 0x4 - core index']
  #allocation1 [shape = 'u32[144,128]{1,0:T(1,128)}', space=vmem, size = 0x12000, scoped, tag = 'internal scratch']
  %s0 = inlined_call_operand.vmem [shape: f32[2,512], index: 0, kind: input, shape index: {}]
  %s1 = inlined_call_operand.vmem [shape: bf16[167,512], index: 1, kind: input, shape index: {}]
  %s2 = inlined_call_operand.vmem [shape: bf16[6,167], index: 2, kind: input, shape index: {}]
  %s3 = inlined_call_operand.vmem [shape: f32[8,512], index: 3, kind: output, shape index: {}]
  %s4 = sld [smem:[#allocation0]]
  $region86: #{conv_scale_forward.3} parent=0
    _
  %s6 = ssub.s32 1, %s4
  %s7 = scalar_select 0, %s6, %s4
  $region1: #{conv_scale_forward.3} parent=0
    #allocation2 [shape = 'u8[86016]{0}', space=vmem, size = 0x15000, scoped, tag = 'input window, operand 1']
    loop: start=0, step=1, limit=6
    $region2: #{conv_scale_forward.3} parent=1 // loop_pre_header
      _
    $region3: #{conv_scale_forward.3} parent=1 // loop_header
      %s9 = sphi 0, %s13
      %p10 = scmp.ge.s32.totalorder %s9, 6
      %s19 = sphi 0, %s21
      %s22 = sphi 0, %s19
      %s23 = sphi 0, %s22
      %s39 = sphi 0, %s23
      %s45 = sphi 0, %s47
      %s48 = sphi 0, %s45
      %s49 = sphi 0, %s48
      %s65 = sphi 0, %s49
      %s69 = sphi 0, %s69
      %s71 = sphi 0, %s69
      %s72 = sphi 0, %s71
      %s86 = sphi 0, %s72
      %s92 = sphi 0, %s94
      %s95 = sphi 0, %s92
      %s96 = sphi 0, %s95
      %s112 = sphi 0, %s96
    $region4: #{conv_scale_forward.3} parent=1 // loop_header_branch
      %12 = sbr.rel (%p10) target = $region8
    $region5: #{conv_scale_forward.3} parent=1 // loop_body
      %s14 = ssub.s32 %s9, 1
      %s15 = ssub.s32 %s9, 2
      %s16 = sadd.s32 %s9, 1
      %s17 = ssub.s32 %s9, %s16
      %p18 = scmp.eq.s32.totalorder %s17, 0
      %s20 = sadd.s32 %s19, 1
      %s21 = scalar_select %p18, %s19, %s20
      %p24 = pneg %p18
      %p25 = scmp.eq.s32.totalorder %s9, 3
      %p26 = por %p24, %p25
      %p27 = scmp.ne.s32.totalorder %s19, %s22
      %p28 = scmp.eq.s32.totalorder %s9, 0
      %p29 = por %p27, %p28
      %p30 = scmp.ne.s32.totalorder %s19, %s22
      %p31 = scmp.eq.s32.totalorder %s14, 3
      %p32 = por %p30, %p31
      %p33 = scmp.ne.s32.totalorder %s22, %s23
      %p34 = scmp.eq.s32.totalorder %s14, 0
      %p35 = por %p33, %p34
      %p36 = scmp.ne.s32.totalorder %s22, %s23
      %p37 = scmp.eq.s32.totalorder %s15, 3
      %p38 = por %p36, %p37
      %p40 = scmp.ne.s32.totalorder %s23, %s39
      %p41 = scmp.eq.s32.totalorder %s15, 0
      %p42 = por %p40, %p41
      %s43 = ssub.s32 %s9, %s16
      %p44 = scmp.eq.s32.totalorder %s43, 0
      %s46 = sadd.s32 %s45, 1
      %s47 = scalar_select %p44, %s45, %s46
      %p50 = pneg %p44
      %p51 = scmp.eq.s32.totalorder %s9, 3
      %p52 = por %p50, %p51
      %p53 = scmp.ne.s32.totalorder %s45, %s48
      %p54 = scmp.eq.s32.totalorder %s9, 0
      %p55 = por %p53, %p54
      %p56 = scmp.ne.s32.totalorder %s45, %s48
      %p57 = scmp.eq.s32.totalorder %s14, 3
      %p58 = por %p56, %p57
      %p59 = scmp.ne.s32.totalorder %s48, %s49
      %p60 = scmp.eq.s32.totalorder %s14, 0
      %p61 = por %p59, %p60
      %p62 = scmp.ne.s32.totalorder %s48, %s49
      %p63 = scmp.eq.s32.totalorder %s15, 3
      %p64 = por %p62, %p63
      %p66 = scmp.ne.s32.totalorder %s49, %s65
      %p67 = scmp.eq.s32.totalorder %s15, 0
      %p68 = por %p66, %p67
      %s70 = sadd.s32 %s69, 1
      %p73 = scmp.eq.s32.totalorder %s9, 3
      %p74 = scmp.ne.s32.totalorder %s69, %s71
      %p75 = scmp.eq.s32.totalorder %s9, 0
      %p76 = por %p74, %p75
      %p77 = scmp.ne.s32.totalorder %s69, %s71
      %p78 = scmp.eq.s32.totalorder %s14, 3
      %p79 = por %p77, %p78
      %p80 = scmp.ne.s32.totalorder %s71, %s72
      %p81 = scmp.eq.s32.totalorder %s14, 0
      %p82 = por %p80, %p81
      %p83 = scmp.ne.s32.totalorder %s71, %s72
      %p84 = scmp.eq.s32.totalorder %s15, 3
      %p85 = por %p83, %p84
      %p87 = scmp.ne.s32.totalorder %s72, %s86
      %p88 = scmp.eq.s32.totalorder %s15, 0
      %p89 = por %p87, %p88
      %s90 = ssub.s32 %s9, %s16
      %p91 = scmp.eq.s32.totalorder %s90, 0
      %s93 = sadd.s32 %s92, 1
      %s94 = scalar_select %p91, %s92, %s93
      %p97 = pneg %p91
      %p98 = scmp.eq.s32.totalorder %s9, 3
      %p99 = por %p97, %p98
      %p100 = scmp.ne.s32.totalorder %s92, %s95
      %p101 = scmp.eq.s32.totalorder %s9, 0
      %p102 = por %p100, %p101
      %p103 = scmp.ne.s32.totalorder %s92, %s95
      %p104 = scmp.eq.s32.totalorder %s14, 3
      %p105 = por %p103, %p104
      %p106 = scmp.ne.s32.totalorder %s95, %s96
      %p107 = scmp.eq.s32.totalorder %s14, 0
      %p108 = por %p106, %p107
      %p109 = scmp.ne.s32.totalorder %s95, %s96
      %p110 = scmp.eq.s32.totalorder %s15, 3
      %p111 = por %p109, %p110
      %p113 = scmp.ne.s32.totalorder %s96, %s112
      %p114 = scmp.eq.s32.totalorder %s15, 0
      %p115 = por %p113, %p114
      %p116 = scmp.le.s32.totalorder 1, %s9
      %p117 = scmp.lt.s32.totalorder %s9, 5
      %p118 = pnand %p116, %p117
      %p119 = pneg %p118
      // Predicated region
      $region9: #{conv_scale_forward.3} parent=5 // pred_check
        _
      $region10: #{conv_scale_forward.3} parent=5 // pred_check_branch
        %121 = sbr.rel (%p118) target = $region12
      $region11: #{conv_scale_forward.3} parent=5 // pred_region
        %s122 = ssub.s32 %s9, 1
        // Predicated region
        $region13: #{conv_scale_forward.3} parent=11 // pred_check
          %p123 = pneg %p82
        $region14: #{conv_scale_forward.3} parent=11 // pred_check_branch
          %125 = sbr.rel (%p123) target = $region16
        $region15: #{conv_scale_forward.3} parent=11 // pred_region
          _
        $region16: #{conv_scale_forward.3} parent=11 // pred_fallthru
          _
      $region12: #{conv_scale_forward.3} parent=5 // pred_fallthru
        _
      %p126 = scmp.lt.s32.totalorder %s9, 4
      // Predicated region
      $region17: #{conv_scale_forward.3} parent=5 // pred_check
        %p127 = pneg %p126
      $region18: #{conv_scale_forward.3} parent=5 // pred_check_branch
        %129 = sbr.rel (%p127) target = $region20
      $region19: #{conv_scale_forward.3} parent=5 // pred_region
        // Predicated region
        $region21: #{conv_scale_forward.3} parent=19 // pred_check
          %p130 = pneg %p29
        $region22: #{conv_scale_forward.3} parent=19 // pred_check_branch
          %132 = sbr.rel (%p130) target = $region24
        $region23: #{conv_scale_forward.3} parent=19 // pred_region
          %p133 = scmp.lt.s32.totalorder %s9, 3
          %s134 = scalar_select %p133, %s9, 3
          %s135 = smul.addr %s134, 2
          %s136 = scalar_lea.vmem %s0, %s135
        $region24: #{conv_scale_forward.3} parent=19 // pred_fallthru
          _
        // Predicated region
        $region25: #{conv_scale_forward.3} parent=19 // pred_check
          %p137 = pneg %p55
        $region26: #{conv_scale_forward.3} parent=19 // pred_check_branch
          %139 = sbr.rel (%p137) target = $region28
        $region27: #{conv_scale_forward.3} parent=19 // pred_region
          %s140 = sand.u32 %s45, 1
          %s141 = sand.u32 %s45, 1
          %s142 = smul.addr %s141, 84
          %s143 = scalar_lea.vmem [#allocation2], %s142
          %s144 = smul.addr %s9, 4
          %s145 = scalar_lea.vmem %s1, %s144
          // Predicated region
          $region29: #{conv_scale_forward.3} parent=27 // pred_check
            _
          $region30: #{conv_scale_forward.3} parent=27 // pred_check_branch
            %147 = sbr.rel (0) target = $region32
          $region31: #{conv_scale_forward.3} parent=27 // pred_region
            // Predicated region
            $region33: #{conv_scale_forward.3} parent=31 // pred_check
              _
            $region34: #{conv_scale_forward.3} parent=31 // pred_check_branch
              %149 = sbr.rel target = $region36
            $region35: #{conv_scale_forward.3} parent=31 // pred_region
              // Predicated region
              $region48: #{conv_scale_forward.3} parent=35 // pred_check
                _
              $region49: #{conv_scale_forward.3} parent=35 // pred_check_branch
                %204 = sbr.rel (0) target = $region51
              $region50: #{conv_scale_forward.3} parent=35 // pred_region
                loop: start=0, step=1, limit=1
                $region52: #{conv_scale_forward.3} parent=50 // loop_pre_header
                  _
                $region53: #{conv_scale_forward.3} parent=50 // loop_header
                  %s206 = sphi 0, %s210
                  %p207 = scmp.ge.s32.totalorder %s206, 1
                  %s211 = sphi %s145, %s145
                  %s212 = sphi %s143, %s143
                $region54: #{conv_scale_forward.3} parent=50 // loop_header_branch
                  %209 = sbr.rel (%p207) target = $region58
                $region55: #{conv_scale_forward.3} parent=50 // loop_body
                  _
                $region56: #{conv_scale_forward.3} parent=50 // loop_footer
                  %s210 = sadd.s32 1, %s206
                $region57: #{conv_scale_forward.3} parent=50 // loop_footer_branch
                  %205 = sbr.rel target = $region53
                $region58: #{conv_scale_forward.3} parent=50 // loop_exit
                  _
                loop: start=0, step=1, limit=1
                $region59: #{conv_scale_forward.3} parent=50 // loop_pre_header
                  _
                $region60: #{conv_scale_forward.3} parent=50 // loop_header
                  %s215 = sphi 0, %s219
                  %p216 = scmp.ge.s32.totalorder %s215, 1
                  %s220 = sphi %s145, %s145
                  %s221 = sphi %s143, %s143
                $region61: #{conv_scale_forward.3} parent=50 // loop_header_branch
                  %218 = sbr.rel (%p216) target = $region65
                $region62: #{conv_scale_forward.3} parent=50 // loop_body
                  %v222 = vld [vmem:[%s220] sm:$0xf]
                  %223 = vst [vmem:[%s221] sm:$0xf] %v222
                  %v224 = vld [vmem:[%s220 + $0x10] sm:$0xf]
                  %225 = vst [vmem:[%s221 + $0x4] sm:$0xf] %v224
                  %v226 = vld [vmem:[%s220 + $0x20] sm:$0xf]
                  %227 = vst [vmem:[%s221 + $0x8] sm:$0xf] %v226
                  %v228 = vld [vmem:[%s220 + $0x30] sm:$0xf]
                  %229 = vst [vmem:[%s221 + $0xc] sm:$0xf] %v228
                  %v230 = vld [vmem:[%s220 + $0x40] sm:$0xf]
                  %231 = vst [vmem:[%s221 + $0x10] sm:$0xf] %v230
                  %v232 = vld [vmem:[%s220 + $0x50] sm:$0xf]
                  %233 = vst [vmem:[%s221 + $0x14] sm:$0xf] %v232
                  %v234 = vld [vmem:[%s220 + $0x60] sm:$0xf]
                  %235 = vst [vmem:[%s221 + $0x18] sm:$0xf] %v234
                  %v236 = vld [vmem:[%s220 + $0x70] sm:$0xf]
                  %237 = vst [vmem:[%s221 + $0x1c] sm:$0xf] %v236
                  %v238 = vld [vmem:[%s220 + $0x80] sm:$0xf]
                  %239 = vst [vmem:[%s221 + $0x20] sm:$0xf] %v238
                  %v240 = vld [vmem:[%s220 + $0x90] sm:$0xf]
                  %241 = vst [vmem:[%s221 + $0x24] sm:$0xf] %v240
                  %v242 = vld [vmem:[%s220 + $0xa0] sm:$0xf]
                  %243 = vst [vmem:[%s221 + $0x28] sm:$0xf] %v242
                  %v244 = vld [vmem:[%s220 + $0xb0] sm:$0xf]
                  %245 = vst [vmem:[%s221 + $0x2c] sm:$0xf] %v244
                  %v246 = vld [vmem:[%s220 + $0xc0] sm:$0xf]
                  %247 = vst [vmem:[%s221 + $0x30] sm:$0xf] %v246
                  %v248 = vld [vmem:[%s220 + $0xd0] sm:$0xf]
                  %249 = vst [vmem:[%s221 + $0x34] sm:$0xf] %v248
                  %v250 = vld [vmem:[%s220 + $0xe0] sm:$0xf]
                  %251 = vst [vmem:[%s221 + $0x38] sm:$0xf] %v250
                  %v252 = vld [vmem:[%s220 + $0xf0] sm:$0xf]
                  %253 = vst [vmem:[%s221 + $0x3c] sm:$0xf] %v252
                  %v254 = vld [vmem:[%s220 + $0x100] sm:$0xf]
                  %255 = vst [vmem:[%s221 + $0x40] sm:$0xf] %v254
                  %v256 = vld [vmem:[%s220 + $0x110] sm:$0xf]
                  %257 = vst [vmem:[%s221 + $0x44] sm:$0xf] %v256
                  %v258 = vld [vmem:[%s220 + $0x120] sm:$0xf]
                  %259 = vst [vmem:[%s221 + $0x48] sm:$0xf] %v258
                  %v260 = vld [vmem:[%s220 + $0x130] sm:$0xf]
                  %261 = vst [vmem:[%s221 + $0x4c] sm:$0xf] %v260
                  %v262 = vld [vmem:[%s220 + $0x140] sm:$0xf]
                  %263 = vst [vmem:[%s221 + $0x50] sm:$0xf] %v262
                $region63: #{conv_scale_forward.3} parent=50 // loop_footer
                  %s219 = sadd.s32 1, %s215
                $region64: #{conv_scale_forward.3} parent=50 // loop_footer_branch
                  %214 = sbr.rel target = $region60
                $region65: #{conv_scale_forward.3} parent=50 // loop_exit
                  _
              $region51: #{conv_scale_forward.3} parent=35 // pred_fallthru
                _
            $region36: #{conv_scale_forward.3} parent=31 // pred_fallthru
              _
            // Predicated region
            $region37: #{conv_scale_forward.3} parent=31 // pred_check
              _
            $region38: #{conv_scale_forward.3} parent=31 // pred_check_branch
              %151 = sbr.rel (0) target = $region40
            $region39: #{conv_scale_forward.3} parent=31 // pred_region
              loop: start=0, step=1, limit=1
              $region41: #{conv_scale_forward.3} parent=39 // loop_pre_header
                _
              $region42: #{conv_scale_forward.3} parent=39 // loop_header
                %s154 = sphi 0, %s158
                %p155 = scmp.ge.s32.totalorder %s154, 1
                %s159 = sphi %s145, %s145
                %s160 = sphi %s143, %s143
              $region43: #{conv_scale_forward.3} parent=39 // loop_header_branch
                %157 = sbr.rel (%p155) target = $region47
              $region44: #{conv_scale_forward.3} parent=39 // loop_body
                %v161 = vld [vmem:[%s159] sm:$0xf]
                %162 = vst [vmem:[%s160] sm:$0xf] %v161
                %v163 = vld [vmem:[%s159 + $0x10] sm:$0xf]
                %164 = vst [vmem:[%s160 + $0x4] sm:$0xf] %v163
                %v165 = vld [vmem:[%s159 + $0x20] sm:$0xf]
                %166 = vst [vmem:[%s160 + $0x8] sm:$0xf] %v165
                %v167 = vld [vmem:[%s159 + $0x30] sm:$0xf]
                %168 = vst [vmem:[%s160 + $0xc] sm:$0xf] %v167
                %v169 = vld [vmem:[%s159 + $0x40] sm:$0xf]
                %170 = vst [vmem:[%s160 + $0x10] sm:$0xf] %v169
                %v171 = vld [vmem:[%s159 + $0x50] sm:$0xf]
                %172 = vst [vmem:[%s160 + $0x14] sm:$0xf] %v171
                %v173 = vld [vmem:[%s159 + $0x60] sm:$0xf]
                %174 = vst [vmem:[%s160 + $0x18] sm:$0xf] %v173
                %v175 = vld [vmem:[%s159 + $0x70] sm:$0xf]
                %176 = vst [vmem:[%s160 + $0x1c] sm:$0xf] %v175
                %v177 = vld [vmem:[%s159 + $0x80] sm:$0xf]
                %178 = vst [vmem:[%s160 + $0x20] sm:$0xf] %v177
                %v179 = vld [vmem:[%s159 + $0x90] sm:$0xf]
                %180 = vst [vmem:[%s160 + $0x24] sm:$0xf] %v179
                %v181 = vld [vmem:[%s159 + $0xa0] sm:$0xf]
                %182 = vst [vmem:[%s160 + $0x28] sm:$0xf] %v181
                %v183 = vld [vmem:[%s159 + $0xb0] sm:$0xf]
                %184 = vst [vmem:[%s160 + $0x2c] sm:$0xf] %v183
                %v185 = vld [vmem:[%s159 + $0xc0] sm:$0xf]
                %186 = vst [vmem:[%s160 + $0x30] sm:$0xf] %v185
                %v187 = vld [vmem:[%s159 + $0xd0] sm:$0xf]
                %188 = vst [vmem:[%s160 + $0x34] sm:$0xf] %v187
                %v189 = vld [vmem:[%s159 + $0xe0] sm:$0xf]
                %190 = vst [vmem:[%s160 + $0x38] sm:$0xf] %v189
                %v191 = vld [vmem:[%s159 + $0xf0] sm:$0xf]
                %192 = vst [vmem:[%s160 + $0x3c] sm:$0xf] %v191
                %v193 = vld [vmem:[%s159 + $0x100] sm:$0xf]
                %194 = vst [vmem:[%s160 + $0x40] sm:$0xf] %v193
                %v195 = vld [vmem:[%s159 + $0x110] sm:$0xf]
                %196 = vst [vmem:[%s160 + $0x44] sm:$0xf] %v195
                %v197 = vld [vmem:[%s159 + $0x120] sm:$0xf]
                %198 = vst [vmem:[%s160 + $0x48] sm:$0xf] %v197
                %v199 = vld [vmem:[%s159 + $0x130] sm:$0xf]
                %200 = vst [vmem:[%s160 + $0x4c] sm:$0xf] %v199
                %v201 = vld [vmem:[%s159 + $0x140] sm:$0xf]
                %202 = vst [vmem:[%s160 + $0x50] sm:$0xf] %v201
              $region45: #{conv_scale_forward.3} parent=39 // loop_footer
                %s158 = sadd.s32 1, %s154
              $region46: #{conv_scale_forward.3} parent=39 // loop_footer_branch
                %153 = sbr.rel target = $region42
              $region47: #{conv_scale_forward.3} parent=39 // loop_exit
                _
            $region40: #{conv_scale_forward.3} parent=31 // pred_fallthru
              _
          $region32: #{conv_scale_forward.3} parent=27 // pred_fallthru
            _
          %264 = vnop
        $region28: #{conv_scale_forward.3} parent=19 // pred_fallthru
          _
      $region20: #{conv_scale_forward.3} parent=5 // pred_fallthru
        _
      %p265 = scmp.le.s32.totalorder 1, %s9
      %p266 = scmp.lt.s32.totalorder %s9, 5
      %p267 = pnand %p265, %p266
      %p268 = pneg %p267
      // Predicated region
      $region66: #{conv_scale_forward.3} parent=5 // pred_check
        _
      $region67: #{conv_scale_forward.3} parent=5 // pred_check_branch
        %270 = sbr.rel (%p267) target = $region69
      $region68: #{conv_scale_forward.3} parent=5 // pred_region
        %s271 = ssub.s32 %s9, 1
        %s272 = sand.u32 %s48, 1
        %s273 = sand.u32 %s48, 1
        %s274 = smul.addr %s273, 84
        %s275 = scalar_lea.vmem [#allocation2], %s274
        // Predicated region
        $region70: #{conv_scale_forward.3} parent=68 // pred_check
          %p276 = pneg %p61
        $region71: #{conv_scale_forward.3} parent=68 // pred_check_branch
          %278 = sbr.rel (%p276) target = $region73
        $region72: #{conv_scale_forward.3} parent=68 // pred_region
          _
        $region73: #{conv_scale_forward.3} parent=68 // pred_fallthru
          _
        %p279 = scmp.lt.s32.totalorder %s14, 3
        %s280 = scalar_select %p279, %s14, 3
        %s281 = smul.addr %s280, 2
        %s282 = scalar_lea.vmem %s0, %s281
        %p283 = pneg %p35
        %p284 = pneg %p32
        %s285 = sand.u32 %s48, 1
        %s286 = sand.u32 %s48, 1
        %s287 = smul.addr %s286, 84
        %s288 = scalar_lea.vmem [#allocation2], %s287
        %p289 = pneg %p61
        %p290 = pneg %p58
        %p291 = pneg %p82
        %p292 = pneg %p79
        %p293 = pneg %p108
        %p294 = pneg %p105
        %p295 = scmp.lt.s32.totalorder %s14, 3
        %s296 = scalar_select %p295, %s14, 3
        %s297 = smul.addr %s296, 8
        %s298 = scalar_lea.vmem %s3, %s297
        %p299 = scmp.lt.s32.totalorder %s14, 3
        %s300 = scalar_select %p299, %s14, 3
        %s301 = smul.addr %s300, 2
        %s302 = scalar_lea.vmem %s0, %s301
        %p303 = scmp.lt.s32.totalorder %s14, 3
        %s304 = scalar_select %p303, %s14, 3
        %s305 = smul.addr %s304, 8
        %s306 = scalar_lea.vmem %s3, %s305
        %v308 = vld [vmem:[%s2] sm:$0x77]
        %v309 = vld [vmem:[%s275] sm:$0xf]
        %v310 = vld [vmem:[%s275 + $0x4] sm:$0xf]
        %v311 = vld [vmem:[%s275 + $0x8] sm:$0xf]
        %v312 = vld [vmem:[%s275 + $0xc] sm:$0xf]
        %v313 = vld [vmem:[%s275 + $0x10] sm:$0xf]
        %v314 = vld [vmem:[%s275 + $0x14] sm:$0xf]
        %v315 = vld [vmem:[%s275 + $0x18] sm:$0xf]
        %v316 = vld [vmem:[%s275 + $0x1c] sm:$0xf]
        %v317 = vld [vmem:[%s275 + $0x20] sm:$0xf]
        %v318 = vld [vmem:[%s275 + $0x24] sm:$0xf]
        %v319 = vld [vmem:[%s275 + $0x28] sm:$0xf]
        %v320 = vld [vmem:[%s275 + $0x2c] sm:$0xf]
        %v321 = vld [vmem:[%s275 + $0x30] sm:$0xf]
        %v322 = vld [vmem:[%s275 + $0x34] sm:$0xf]
        %v323 = vld [vmem:[%s275 + $0x38] sm:$0xf]
        %v324 = vld [vmem:[%s275 + $0x3c] sm:$0xf]
        %v325 = vld [vmem:[%s275 + $0x40] sm:$0xf]
        %v326 = vld [vmem:[%s275 + $0x44] sm:$0xf]
        %v327 = vld [vmem:[%s275 + $0x48] sm:$0xf]
        %v328 = vld [vmem:[%s275 + $0x4c] sm:$0xf]
        %v329 = vld [vmem:[%s275 + $0x50] sm:$0xf]
        %v331 = vunpack.c.l.b16 %v308
        %v332 = vunpack.c.h.b16 %v308
        %v333 = vpack.c.b16 %v331, %v331
        %v334 = vpack.c.b16 %v332, %v332
        %v357 = vunpack.c.l.b16 %v309
        %v358 = vunpack.c.l.b16 %v310
        %v359 = vunpack.c.l.b16 %v311
        %v360 = vunpack.c.l.b16 %v312
        %v361 = vunpack.c.l.b16 %v313
        %v362 = vunpack.c.l.b16 %v314
        %v363 = vunpack.c.l.b16 %v315
        %v364 = vunpack.c.l.b16 %v316
        %v365 = vunpack.c.l.b16 %v317
        %v366 = vunpack.c.l.b16 %v318
        %v367 = vunpack.c.l.b16 %v319
        %v368 = vunpack.c.l.b16 %v320
        %v369 = vunpack.c.l.b16 %v321
        %v370 = vunpack.c.l.b16 %v322
        %v371 = vunpack.c.l.b16 %v323
        %v372 = vunpack.c.l.b16 %v324
        %v373 = vunpack.c.l.b16 %v325
        %v374 = vunpack.c.l.b16 %v326
        %v375 = vunpack.c.l.b16 %v327
        %v376 = vunpack.c.l.b16 %v328
        %v377 = vunpack.c.l.b16 %v329
        %v378 = vpack.c.b16 %v358, %v357
        %v379 = vpack.c.b16 %v360, %v359
        %v380 = vpack.c.b16 %v362, %v361
        %v381 = vpack.c.b16 %v364, %v363
        %v382 = vpack.c.b16 %v366, %v365
        %v383 = vpack.c.b16 %v368, %v367
        %v384 = vpack.c.b16 %v370, %v369
        %v385 = vpack.c.b16 %v372, %v371
        %v386 = vpack.c.b16 %v374, %v373
        %v387 = vpack.c.b16 %v376, %v375
        %v388 = vpack.c.b16 %v377, %v377
        %vm399 = vcmask 318464
        %v401 = vsel %vm399, %v334, 0
        %vm403 = vcmask 1042432
        %vm404 = vcmask 1043456
        %v405 = vsel %vm403, 4294967295, 65535
        %v406 = vsel %vm404, %v405, 0
        %v408 = vand.u32 %v388, %v406
        %410 = vmatprep.subr.bf16.mxu0 0
        %411 = vmatpush1.bf16.msra.mxu0 %v378
        %412 = vmatprep.subr.bf16.mxu0 0
        %413 = vmatpush1.bf16.msra.mxu0 %v379
        %414 = vmatprep.subr.bf16.mxu0 0
        %415 = vmatpush1.bf16.msra.mxu0 %v380
        %416 = vmatprep.subr.bf16.mxu0 0
        %417 = vmatpush1.bf16.msra.mxu0 %v381
        %418 = vmatprep.subr.bf16.mxu0 0
        %419 = vmatpush1.bf16.msra.mxu0 %v382
        %420 = vmatprep.subr.bf16.mxu0 0
        %421 = vmatpush1.bf16.msra.mxu0 %v383
        %422 = vmatprep.subr.bf16.mxu0 0
        %423 = vmatpush1.bf16.msra.mxu0 %v384
        %424 = vmatprep.subr.bf16.mxu0 0
        %425 = vmatpush1.bf16.msra.mxu0 %v385
        %426 = vmatprep.subr.bf16.mxu0 0
        %427 = vmatpush1.bf16.msra.mxu0 %v386
        %428 = vmatprep.subr.bf16.mxu0 0
        %429 = vmatpush1.bf16.msra.mxu0 %v387
        %430 = vmatprep.subr.bf16.mxu0 0
        %431 = vmatpush1.bf16.msra.mxu0 %v408
        %432 = vmatprep.subr.bf16.mxu0 0
        %433 = vmatpush1.bf16.msra.mxu0 0
        %434 = vmatprep.subr.bf16.mxu0 0
        %435 = vmatpush1.bf16.msra.mxu0 0
        %436 = vmatprep.subr.bf16.mxu0 0
        %437 = vmatpush1.bf16.msra.mxu0 0
        %438 = vmatprep.subr.bf16.mxu0 0
        %439 = vmatpush1.bf16.msra.mxu0 0
        %440 = vmatprep.subr.bf16.mxu0 0
        %441 = vmatpush1.bf16.msra.mxu0 0
        %442 = vmatprep.mubr.bf16.mxu0 %v401
        %443 = vmatmul.mubr.bf16.gmra.mrb[0].mxu0 %v333
        %v444 = vpop.f32.mrb[0].mxu0
        %v445 = vadd.f32 0.0, %v444
        %v446 = vpop.f32.mrb[0].mxu0
        %v447 = vpop.f32.mrb[0].mxu0
        %v448 = vpop.f32.mrb[0].mxu0
        %449 = vdwg.mxu0
        %v450 = vld [vmem:[%s302] sm:$0x3]
        %v451 = vmax.f32 %v450, 0.0
        %452 = vst [vmem:[%s306] sm:$0x3] %v451
        %v453 = vmax.f32 %v445, 0.0
        %454 = vst [vmem:[%s306 + $0x2] sm:$0x3f] %v453
        %p455 = scmp.lt.s32.totalorder %s14, 3
        %s456 = scalar_select %p455, %s14, 3
        %s457 = smul.addr %s456, 8
        %s458 = scalar_lea.vmem %s3, %s457
        // Predicated region
        $region74: #{conv_scale_forward.3} parent=68 // pred_check
          %p459 = pneg %p105
        $region75: #{conv_scale_forward.3} parent=68 // pred_check_branch
          %461 = sbr.rel (%p459) target = $region77
        $region76: #{conv_scale_forward.3} parent=68 // pred_region
          _
        $region77: #{conv_scale_forward.3} parent=68 // pred_fallthru
          _
      $region69: #{conv_scale_forward.3} parent=5 // pred_fallthru
        _
      %p462 = scmp.le.s32.totalorder 2, %s9
      // Predicated region
      $region78: #{conv_scale_forward.3} parent=5 // pred_check
        %p463 = pneg %p462
      $region79: #{conv_scale_forward.3} parent=5 // pred_check_branch
        %465 = sbr.rel (%p463) target = $region81
      $region80: #{conv_scale_forward.3} parent=5 // pred_region
        %s466 = ssub.s32 %s9, 2
        // Predicated region
        $region82: #{conv_scale_forward.3} parent=80 // pred_check
          %p467 = pneg %p111
        $region83: #{conv_scale_forward.3} parent=80 // pred_check_branch
          %469 = sbr.rel (%p467) target = $region85
        $region84: #{conv_scale_forward.3} parent=80 // pred_region
          %p470 = scmp.lt.s32.totalorder %s15, 3
          %s471 = scalar_select %p470, %s15, 3
          %s472 = smul.addr %s471, 8
          %s473 = scalar_lea.vmem %s3, %s472
        $region85: #{conv_scale_forward.3} parent=80 // pred_fallthru
          _
      $region81: #{conv_scale_forward.3} parent=5 // pred_fallthru
        _
    $region6: #{conv_scale_forward.3} parent=1 // loop_footer
      %s13 = sadd.s32 1, %s9
    $region7: #{conv_scale_forward.3} parent=1 // loop_footer_branch
      %8 = sbr.rel target = $region3
    $region8: #{conv_scale_forward.3} parent=1 // loop_exit
      _

</llo_original>
